<compile_context>
chip_gen: v6e
topology: v6e:2x2x1
jax: 0.10.0
libtpu: 0.0.40
codegen_flags: <defaults>
</compile_context>

<pallas_src>
import jax
import jax.numpy as jnp
from jax.experimental import pallas as pl
from jax.experimental.pallas import tpu as pltpu


def _round_up(n, m):
    return (n + m - 1) // m * m


def _pad2d(a, rows, cols, dtype):
    out = jnp.zeros((rows, cols), dtype)
    return out.at[: a.shape[0], : a.shape[1]].set(a.astype(dtype))


def mlp_kernel(x_ref, w1_ref, b1_ref, w2_ref, b2_ref, w3_ref, b3_ref,
               o_ref, h1_ref, h2_ref):
    # fc1 + ReLU (bf16 operands on the MXU, f32 accumulate)
    h1 = jnp.dot(x_ref[...], w1_ref[...], preferred_element_type=jnp.float32)
    h1 = jnp.maximum(h1 + b1_ref[...], 0.0)
    h1_ref[...] = h1.astype(h1_ref.dtype)          # stage through VMEM (bf16)
    # fc2 + ReLU
    h2 = jnp.dot(h1_ref[...], w2_ref[...], preferred_element_type=jnp.float32)
    h2 = jnp.maximum(h2 + b2_ref[...], 0.0)
    h2_ref[...] = h2.astype(h2_ref.dtype)
    # fc3 (no activation)
    out = jnp.dot(h2_ref[...], w3_ref[...], preferred_element_type=jnp.float32) + b3_ref[...]
    o_ref[...] = out.astype(o_ref.dtype)


def mlp_forward(x, params, *, tb=None, compute_dtype=jnp.bfloat16):
    """x: [B, input_size] float32.  params: transposed weights / biases (see init_params)."""
    B, D_in = x.shape
    H = params["w1"].shape[1]            # 2 * input_size
    D_out = params["w3"].shape[1]

    # Pad all feature dims to full 128-lane vregs (lane-dense stores, aligned MXU tiles).
    D_in_p = _round_up(D_in, 128)
    H_p = _round_up(H, 128)
    D_out_p = _round_up(D_out, 128)

    # Batch tile: large tiles for DMA efficiency, but >= 2 tiles whenever possible so the
    # pipeline overlaps and v7x can split the "parallel" axis across its 2 TensorCores.
    B_p = _round_up(B, 8)
    if tb is None:
        tb = min(B_p, 256)
        if B_p >= 16 and pl.cdiv(B_p, tb) < 2:
            tb = _round_up(pl.cdiv(B_p, 2), 8)
    tb = min(_round_up(tb, 8), B_p)
    B_p = _round_up(B_p, tb)             # padded batch is an exact multiple of the tile
    grid = (B_p // tb,)

    # Zero-padding is exact: ReLU(0) = 0 and zero weight rows/cols contribute nothing;
    # padded output rows/cols are sliced off below.
    xp = _pad2d(x, B_p, D_in_p, compute_dtype)
    w1 = _pad2d(params["w1"], D_in_p, H_p, compute_dtype)
    w2 = _pad2d(params["w2"], H_p, H_p, compute_dtype)
    w3 = _pad2d(params["w3"], H_p, D_out_p, compute_dtype)
    b1 = _pad2d(params["b1"], 1, H_p, jnp.float32)
    b2 = _pad2d(params["b2"], 1, H_p, jnp.float32)
    b3 = _pad2d(params["b3"], 1, D_out_p, jnp.float32)

    # VMEM budget (weights/biases get double-buffered by the pipeline even though their
    # block index is constant; x/out tiles are double-buffered; scratch is single).
    cd_bytes = jnp.dtype(compute_dtype).itemsize
    w_bytes = (D_in_p * H_p + H_p * H_p + H_p * D_out_p) * cd_bytes
    b_bytes = (2 * H_p + D_out_p) * 4
    io_bytes = 2 * (tb * D_in_p * cd_bytes + tb * D_out_p * 4)
    scratch_bytes = 2 * tb * H_p * cd_bytes
    vmem_need = 2 * (w_bytes + b_bytes) + io_bytes + scratch_bytes
    vmem_limit = min(max(int(vmem_need * 1.25), 32 * 1024 * 1024), 60 * 1024 * 1024)

    flops = 2 * B_p * (D_in_p * H_p + H_p * H_p + H_p * D_out_p)
    bytes_accessed = (B_p * D_in_p * cd_bytes + w_bytes + b_bytes + B_p * D_out_p * 4)

    out = pl.pallas_call(
        mlp_kernel,
        out_shape=jax.ShapeDtypeStruct((B_p, D_out_p), jnp.float32),
        grid_spec=pltpu.PrefetchScalarGridSpec(
            num_scalar_prefetch=0,
            grid=grid,
            in_specs=[
                pl.BlockSpec((tb, D_in_p), lambda i: (i, 0)),     # x tile (pipelined)
                pl.BlockSpec((D_in_p, H_p), lambda i: (0, 0)),    # w1 (resident)
                pl.BlockSpec((1, H_p), lambda i: (0, 0)),         # b1
                pl.BlockSpec((H_p, H_p), lambda i: (0, 0)),       # w2
                pl.BlockSpec((1, H_p), lambda i: (0, 0)),         # b2
                pl.BlockSpec((H_p, D_out_p), lambda i: (0, 0)),   # w3
                pl.BlockSpec((1, D_out_p), lambda i: (0, 0)),     # b3
            ],
            out_specs=pl.BlockSpec((tb, D_out_p), lambda i: (i, 0)),
            scratch_shapes=[
                pltpu.VMEM((tb, H_p), compute_dtype),             # h1 staging
                pltpu.VMEM((tb, H_p), compute_dtype),             # h2 staging
            ],
        ),
        compiler_params=pltpu.CompilerParams(
            dimension_semantics=("parallel",),
            vmem_limit_bytes=vmem_limit,
        ),
        cost_estimate=pl.CostEstimate(
            flops=flops, transcendentals=0, bytes_accessed=bytes_accessed),
    )(xp, w1, b1, w2, b2, w3, b3)

    return out[:B, :D_out]


def init_params(key, input_size, output_size):
    """Deterministic init matching PyTorch Linear shapes (weights stored transposed, f32)."""
    hidden = input_size * 2
    ks = jax.random.split(key, 6)

    def lin(kw, kb, fan_in, fan_out):
        bound = 1.0 / jnp.sqrt(fan_in)
        w = jax.random.uniform(kw, (fan_in, fan_out), jnp.float32, -bound, bound)
        b = jax.random.uniform(kb, (1, fan_out), jnp.float32, -bound, bound)
        return w, b

    w1, b1 = lin(ks[0], ks[1], input_size, hidden)
    w2, b2 = lin(ks[2], ks[3], hidden, hidden)
    w3, b3 = lin(ks[4], ks[5], hidden, output_size)
    return {"w1": w1, "b1": b1, "w2": w2, "b2": b2, "w3": w3, "b3": b3}


def mlp_reference(x, p, compute_dtype=jnp.bfloat16):
    """Reference with the same bf16-operand / f32-accumulate numerics as the kernel."""
    cd, f32 = compute_dtype, jnp.float32
    h1 = jnp.maximum(
        jnp.dot(x.astype(cd), p["w1"].astype(cd), preferred_element_type=f32) + p["b1"], 0.0)
    h2 = jnp.maximum(
        jnp.dot(h1.astype(cd), p["w2"].astype(cd), preferred_element_type=f32) + p["b2"], 0.0)
    return jnp.dot(h2.astype(cd), p["w3"].astype(cd), preferred_element_type=f32) + p["b3"]


if __name__ == "__main__":
    input_size = 32
    output_size = 8
    batch = 50          # non-multiple of the tile: exercises padding + the 2-step grid

    key = jax.random.PRNGKey(0)
    kx, kp = jax.random.split(key)
    x = jax.random.normal(kx, (batch, input_size), jnp.float32)
    params = init_params(kp, input_size, output_size)

    out = mlp_forward(x, params)
    out = jax.block_until_ready(out)

    ref = mlp_reference(x, params)
    assert out.shape == (batch, output_size)
    assert jnp.allclose(out, ref, atol=1e-3, rtol=1e-3), float(jnp.max(jnp.abs(out - ref)))

    print("KERNEL_OK")
</pallas_src>

<mosaic_0001>
module attributes {stable_mosaic.version = 11 : i64} {
  func.func @mlp_kernel(%arg0: i32, %arg1: memref<32x128xbf16, #tpu.memory_space<vmem>>, %arg2: memref<128x128xbf16, #tpu.memory_space<vmem>>, %arg3: memref<1x128xf32, #tpu.memory_space<vmem>>, %arg4: memref<128x128xbf16, #tpu.memory_space<vmem>>, %arg5: memref<1x128xf32, #tpu.memory_space<vmem>>, %arg6: memref<128x128xbf16, #tpu.memory_space<vmem>>, %arg7: memref<1x128xf32, #tpu.memory_space<vmem>>, %arg8: memref<32x128xf32, #tpu.memory_space<vmem>>, %arg9: memref<32x128xbf16, #tpu.memory_space<vmem>>, %arg10: memref<32x128xbf16, #tpu.memory_space<vmem>>) attributes {dimension_semantics = [#tpu.dimension_semantics<parallel>], iteration_bounds = array<i64: 2>, scalar_prefetch = 0 : i64, scratch_operands = 2 : i64, tpu.core_type = #tpu.core_type<tc>, window_params = [{transform_indices = @transform_0, window_bounds = array<i64: 32, 128>}, {pipeline_mode = #tpu.pipeline_mode<synchronous>, transform_indices = @transform_1, window_bounds = array<i64: 128, 128>}, {pipeline_mode = #tpu.pipeline_mode<synchronous>, transform_indices = @transform_2, window_bounds = array<i64: 1, 128>}, {pipeline_mode = #tpu.pipeline_mode<synchronous>, transform_indices = @transform_3, window_bounds = array<i64: 128, 128>}, {pipeline_mode = #tpu.pipeline_mode<synchronous>, transform_indices = @transform_4, window_bounds = array<i64: 1, 128>}, {pipeline_mode = #tpu.pipeline_mode<synchronous>, transform_indices = @transform_5, window_bounds = array<i64: 128, 128>}, {pipeline_mode = #tpu.pipeline_mode<synchronous>, transform_indices = @transform_6, window_bounds = array<i64: 1, 128>}, {transform_indices = @transform_7, window_bounds = array<i64: 32, 128>}]} {
    %c0 = arith.constant 0 : index
    %c0_0 = arith.constant 0 : index
    %0 = vector.load %arg1[%c0, %c0_0] : memref<32x128xbf16, #tpu.memory_space<vmem>>, vector<32x128xbf16>
    %c0_1 = arith.constant 0 : index
    %c0_2 = arith.constant 0 : index
    %1 = vector.load %arg2[%c0_1, %c0_2] : memref<128x128xbf16, #tpu.memory_space<vmem>>, vector<128x128xbf16>
    %cst = arith.constant dense<0.000000e+00> : vector<32x128xf32>
    %2 = tpu.matmul %0, %1, %cst {dimension_numbers = #tpu.dot_dimension_numbers<[1], [0], [0], [1], [0, 0, 1, 1], [], []>} : vector<32x128xbf16>, vector<128x128xbf16>, vector<32x128xf32> -> vector<32x128xf32>
    %c0_3 = arith.constant 0 : index
    %c0_4 = arith.constant 0 : index
    %3 = vector.load %arg3[%c0_3, %c0_4] : memref<1x128xf32, #tpu.memory_space<vmem>>, vector<1x128xf32>
    %4 = vector.broadcast %3 : vector<1x128xf32> to vector<32x128xf32>
    %5 = arith.addf %2, %4 : vector<32x128xf32>
    %cst_5 = arith.constant 0.000000e+00 : f32
    %6 = vector.broadcast %cst_5 : f32 to vector<32x128xf32>
    %7 = arith.maximumf %5, %6 : vector<32x128xf32>
    %8 = arith.truncf %7 : vector<32x128xf32> to vector<32x128xbf16>
    %c0_6 = arith.constant 0 : index
    %c0_7 = arith.constant 0 : index
    %9 = vector.load %arg9[%c0_6, %c0_7] : memref<32x128xbf16, #tpu.memory_space<vmem>>, vector<32x128xbf16>
    tpu.vector_store %arg9[%c0_6, %c0_7], %8 {strides = array<i32>} : memref<32x128xbf16, #tpu.memory_space<vmem>>, vector<32x128xbf16>,
    %c0_8 = arith.constant 0 : index
    %c0_9 = arith.constant 0 : index
    %10 = vector.load %arg9[%c0_8, %c0_9] : memref<32x128xbf16, #tpu.memory_space<vmem>>, vector<32x128xbf16>
    %c0_10 = arith.constant 0 : index
    %c0_11 = arith.constant 0 : index
    %11 = vector.load %arg4[%c0_10, %c0_11] : memref<128x128xbf16, #tpu.memory_space<vmem>>, vector<128x128xbf16>
    %cst_12 = arith.constant dense<0.000000e+00> : vector<32x128xf32>
    %12 = tpu.matmul %10, %11, %cst_12 {dimension_numbers = #tpu.dot_dimension_numbers<[1], [0], [0], [1], [0, 0, 1, 1], [], []>} : vector<32x128xbf16>, vector<128x128xbf16>, vector<32x128xf32> -> vector<32x128xf32>
    %c0_13 = arith.constant 0 : index
    %c0_14 = arith.constant 0 : index
    %13 = vector.load %arg5[%c0_13, %c0_14] : memref<1x128xf32, #tpu.memory_space<vmem>>, vector<1x128xf32>
    %14 = vector.broadcast %13 : vector<1x128xf32> to vector<32x128xf32>
    %15 = arith.addf %12, %14 : vector<32x128xf32>
    %cst_15 = arith.constant 0.000000e+00 : f32
    %16 = vector.broadcast %cst_15 : f32 to vector<32x128xf32>
    %17 = arith.maximumf %15, %16 : vector<32x128xf32>
    %18 = arith.truncf %17 : vector<32x128xf32> to vector<32x128xbf16>
    %c0_16 = arith.constant 0 : index
    %c0_17 = arith.constant 0 : index
    %19 = vector.load %arg10[%c0_16, %c0_17] : memref<32x128xbf16, #tpu.memory_space<vmem>>, vector<32x128xbf16>
    tpu.vector_store %arg10[%c0_16, %c0_17], %18 {strides = array<i32>} : memref<32x128xbf16, #tpu.memory_space<vmem>>, vector<32x128xbf16>,
    %c0_18 = arith.constant 0 : index
    %c0_19 = arith.constant 0 : index
    %20 = vector.load %arg10[%c0_18, %c0_19] : memref<32x128xbf16, #tpu.memory_space<vmem>>, vector<32x128xbf16>
    %c0_20 = arith.constant 0 : index
    %c0_21 = arith.constant 0 : index
    %21 = vector.load %arg6[%c0_20, %c0_21] : memref<128x128xbf16, #tpu.memory_space<vmem>>, vector<128x128xbf16>
    %cst_22 = arith.constant dense<0.000000e+00> : vector<32x128xf32>
    %22 = tpu.matmul %20, %21, %cst_22 {dimension_numbers = #tpu.dot_dimension_numbers<[1], [0], [0], [1], [0, 0, 1, 1], [], []>} : vector<32x128xbf16>, vector<128x128xbf16>, vector<32x128xf32> -> vector<32x128xf32>
    %c0_23 = arith.constant 0 : index
    %c0_24 = arith.constant 0 : index
    %23 = vector.load %arg7[%c0_23, %c0_24] : memref<1x128xf32, #tpu.memory_space<vmem>>, vector<1x128xf32>
    %24 = vector.broadcast %23 : vector<1x128xf32> to vector<32x128xf32>
    %25 = arith.addf %22, %24 : vector<32x128xf32>
    %c0_25 = arith.constant 0 : index
    %c0_26 = arith.constant 0 : index
    %26 = vector.load %arg8[%c0_25, %c0_26] : memref<32x128xf32, #tpu.memory_space<vmem>>, vector<32x128xf32>
    tpu.vector_store %arg8[%c0_25, %c0_26], %25 {strides = array<i32>} : memref<32x128xf32, #tpu.memory_space<vmem>>, vector<32x128xf32>,
    return
  }
  func.func @transform_0(%arg0: i32) -> (i32, i32) {
    %c0_i32 = arith.constant 0 : i32
    %c0_i32_0 = arith.constant 0 : i32
    return %arg0, %c0_i32 : i32, i32
  }
  func.func @transform_1(%arg0: i32) -> (i32, i32) {
    %c0_i32 = arith.constant 0 : i32
    %c0_i32_0 = arith.constant 0 : i32
    %c0_i32_1 = arith.constant 0 : i32
    return %c0_i32, %c0_i32_0 : i32, i32
  }
  func.func @transform_2(%arg0: i32) -> (i32, i32) {
    %c0_i32 = arith.constant 0 : i32
    %c0_i32_0 = arith.constant 0 : i32
    %c0_i32_1 = arith.constant 0 : i32
    return %c0_i32, %c0_i32_0 : i32, i32
  }
  func.func @transform_3(%arg0: i32) -> (i32, i32) {
    %c0_i32 = arith.constant 0 : i32
    %c0_i32_0 = arith.constant 0 : i32
    %c0_i32_1 = arith.constant 0 : i32
    return %c0_i32, %c0_i32_0 : i32, i32
  }
  func.func @transform_4(%arg0: i32) -> (i32, i32) {
    %c0_i32 = arith.constant 0 : i32
    %c0_i32_0 = arith.constant 0 : i32
    %c0_i32_1 = arith.constant 0 : i32
    return %c0_i32, %c0_i32_0 : i32, i32
  }
  func.func @transform_5(%arg0: i32) -> (i32, i32) {
    %c0_i32 = arith.constant 0 : i32
    %c0_i32_0 = arith.constant 0 : i32
    %c0_i32_1 = arith.constant 0 : i32
    return %c0_i32, %c0_i32_0 : i32, i32
  }
  func.func @transform_6(%arg0: i32) -> (i32, i32) {
    %c0_i32 = arith.constant 0 : i32
    %c0_i32_0 = arith.constant 0 : i32
    %c0_i32_1 = arith.constant 0 : i32
    return %c0_i32, %c0_i32_0 : i32, i32
  }
  func.func @transform_7(%arg0: i32) -> (i32, i32) {
    %c0_i32 = arith.constant 0 : i32
    %c0_i32_0 = arith.constant 0 : i32
    return %arg0, %c0_i32 : i32, i32
  }
}

</mosaic_0001>

<llo_original>
// kernel: tpu_custom_call.1
$region0: #{tpu_custom_call.1}
  #allocation0 [shape = 'u32[]', space=smem, size = 0x4, offset = 0x4, fixed_abs, tag = 'smem constant byte address 0x4 - core index']
  #allocation1 [shape = 'u32[144,128]{1,0:T(1,128)}', space=vmem, size = 0x12000, scoped, tag = 'internal scratch']
  #allocation2 [shape = 'bf16[32,128]{1,0:T(8,128)(2,1)}', space=vmem, size = 0x2000, scoped, tag = 'scratch operand']
  #allocation3 [shape = 'bf16[32,128]{1,0:T(8,128)(2,1)}', space=vmem, size = 0x2000, scoped, tag = 'scratch operand']
  %s0 = inlined_call_operand.hbm [shape: bf16[64,128], index: 0, kind: input, shape index: {}]
  %s1 = inlined_call_operand.hbm [shape: bf16[128,128], index: 1, kind: input, shape index: {}]
  %s2 = inlined_call_operand.vmem [shape: f32[1,128], index: 2, kind: input, shape index: {}]
  %s3 = inlined_call_operand.hbm [shape: bf16[128,128], index: 3, kind: input, shape index: {}]
  %s4 = inlined_call_operand.vmem [shape: f32[1,128], index: 4, kind: input, shape index: {}]
  %s5 = inlined_call_operand.hbm [shape: bf16[128,128], index: 5, kind: input, shape index: {}]
  %s6 = inlined_call_operand.vmem [shape: f32[1,128], index: 6, kind: input, shape index: {}]
  %s7 = inlined_call_operand.hbm [shape: f32[64,128], index: 7, kind: output, shape index: {}]
  %s8 = sld [smem:[#allocation0]]
  $region77: #{tpu_custom_call.1} parent=0
    _
  %s10 = ssub.s32 1, %s8
  %s11 = scalar_select 0, %s10, %s8
  $region1: #{tpu_custom_call.1} parent=0
    #allocation4 [shape = 'u8[16384]{0}', space=vmem, size = 0x4000, scoped, tag = 'input window, operand 0']
    #allocation5 [shape = 's32[2]{0}', space=sflag, size = 0x8, scoped, tag = 'scoped memory for tpu_custom_call.1']
    #allocation6 [shape = 's32[2]{0}', space=sflag, size = 0x8, scoped, tag = 'scoped memory for tpu_custom_call.1']
    #allocation7 [shape = 'u8[32768]{0}', space=vmem, size = 0x8000, scoped, tag = 'input window, operand 1, single buffered']
    #allocation8 [shape = 's32[1]{0}', space=sflag, size = 0x4, scoped, tag = 'scoped memory for tpu_custom_call.1']
    #allocation9 [shape = 'u8[32768]{0}', space=vmem, size = 0x8000, scoped, tag = 'input window, operand 3, single buffered']
    #allocation10 [shape = 'u8[32768]{0}', space=vmem, size = 0x8000, scoped, tag = 'input window, operand 5, single buffered']
    #allocation11 [shape = 's32[1]{0}', space=sflag, size = 0x4, scoped, tag = 'scoped memory for tpu_custom_call.1']
    #allocation12 [shape = 'u8[32768]{0}', space=vmem, size = 0x8000, scoped, tag = 'output window, operand 0']
    %12 = vsyncpa [#allocation5], 0
    %s13 = scalar_lea.sflag [#allocation5], 1
    %14 = vsyncpa %s13, 0
    %15 = vsyncpa [#allocation8], 0
    %16 = vsyncpa [#allocation11], 0
    %17 = vsyncpa [#allocation6], 0
    %s18 = scalar_lea.sflag [#allocation6], 1
    %19 = vsyncpa %s18, 0
    loop: start=0, step=1, limit=4
    $region2: #{tpu_custom_call.1} parent=1 // loop_pre_header
      _
    $region3: #{tpu_custom_call.1} parent=1 // loop_header
      %s21 = sphi 0, %s25
      %p22 = scmp.ge.s32.totalorder %s21, 4
      %s31 = sphi 0, %s33
      %s34 = sphi 0, %s31
      %s35 = sphi 0, %s34
      %s51 = sphi 0, %s35
      %s55 = sphi 0, %s55
      %s57 = sphi 0, %s55
      %s58 = sphi 0, %s57
      %s72 = sphi 0, %s58
      %s76 = sphi 0, %s76
      %s78 = sphi 0, %s76
      %s79 = sphi 0, %s78
      %s93 = sphi 0, %s79
      %s97 = sphi 0, %s97
      %s99 = sphi 0, %s97
      %s100 = sphi 0, %s99
      %s114 = sphi 0, %s100
      %s118 = sphi 0, %s118
      %s120 = sphi 0, %s118
      %s121 = sphi 0, %s120
      %s135 = sphi 0, %s121
      %s139 = sphi 0, %s139
      %s141 = sphi 0, %s139
      %s142 = sphi 0, %s141
      %s156 = sphi 0, %s142
      %s160 = sphi 0, %s160
      %s162 = sphi 0, %s160
      %s163 = sphi 0, %s162
      %s177 = sphi 0, %s163
      %s183 = sphi 0, %s185
      %s186 = sphi 0, %s183
      %s187 = sphi 0, %s186
      %s203 = sphi 0, %s187
    $region4: #{tpu_custom_call.1} parent=1 // loop_header_branch
      %24 = sbr.rel (%p22) target = $region8
    $region5: #{tpu_custom_call.1} parent=1 // loop_body
      %s26 = ssub.s32 %s21, 1
      %s27 = ssub.s32 %s21, 2
      %s28 = sadd.s32 %s21, 1
      %s29 = ssub.s32 %s21, %s28
      %p30 = scmp.eq.s32.totalorder %s29, 0
      %s32 = sadd.s32 %s31, 1
      %s33 = scalar_select %p30, %s31, %s32
      %p36 = pneg %p30
      %p37 = scmp.eq.s32.totalorder %s21, 1
      %p38 = por %p36, %p37
      %p39 = scmp.ne.s32.totalorder %s31, %s34
      %p40 = scmp.eq.s32.totalorder %s21, 0
      %p41 = por %p39, %p40
      %p42 = scmp.ne.s32.totalorder %s31, %s34
      %p43 = scmp.eq.s32.totalorder %s26, 1
      %p44 = por %p42, %p43
      %p45 = scmp.ne.s32.totalorder %s34, %s35
      %p46 = scmp.eq.s32.totalorder %s26, 0
      %p47 = por %p45, %p46
      %p48 = scmp.ne.s32.totalorder %s34, %s35
      %p49 = scmp.eq.s32.totalorder %s27, 1
      %p50 = por %p48, %p49
      %p52 = scmp.ne.s32.totalorder %s35, %s51
      %p53 = scmp.eq.s32.totalorder %s27, 0
      %p54 = por %p52, %p53
      %s56 = sadd.s32 %s55, 1
      %p59 = scmp.eq.s32.totalorder %s21, 1
      %p60 = scmp.ne.s32.totalorder %s55, %s57
      %p61 = scmp.eq.s32.totalorder %s21, 0
      %p62 = por %p60, %p61
      %p63 = scmp.ne.s32.totalorder %s55, %s57
      %p64 = scmp.eq.s32.totalorder %s26, 1
      %p65 = por %p63, %p64
      %p66 = scmp.ne.s32.totalorder %s57, %s58
      %p67 = scmp.eq.s32.totalorder %s26, 0
      %p68 = por %p66, %p67
      %p69 = scmp.ne.s32.totalorder %s57, %s58
      %p70 = scmp.eq.s32.totalorder %s27, 1
      %p71 = por %p69, %p70
      %p73 = scmp.ne.s32.totalorder %s58, %s72
      %p74 = scmp.eq.s32.totalorder %s27, 0
      %p75 = por %p73, %p74
      %s77 = sadd.s32 %s76, 1
      %p80 = scmp.eq.s32.totalorder %s21, 1
      %p81 = scmp.ne.s32.totalorder %s76, %s78
      %p82 = scmp.eq.s32.totalorder %s21, 0
      %p83 = por %p81, %p82
      %p84 = scmp.ne.s32.totalorder %s76, %s78
      %p85 = scmp.eq.s32.totalorder %s26, 1
      %p86 = por %p84, %p85
      %p87 = scmp.ne.s32.totalorder %s78, %s79
      %p88 = scmp.eq.s32.totalorder %s26, 0
      %p89 = por %p87, %p88
      %p90 = scmp.ne.s32.totalorder %s78, %s79
      %p91 = scmp.eq.s32.totalorder %s27, 1
      %p92 = por %p90, %p91
      %p94 = scmp.ne.s32.totalorder %s79, %s93
      %p95 = scmp.eq.s32.totalorder %s27, 0
      %p96 = por %p94, %p95
      %s98 = sadd.s32 %s97, 1
      %p101 = scmp.eq.s32.totalorder %s21, 1
      %p102 = scmp.ne.s32.totalorder %s97, %s99
      %p103 = scmp.eq.s32.totalorder %s21, 0
      %p104 = por %p102, %p103
      %p105 = scmp.ne.s32.totalorder %s97, %s99
      %p106 = scmp.eq.s32.totalorder %s26, 1
      %p107 = por %p105, %p106
      %p108 = scmp.ne.s32.totalorder %s99, %s100
      %p109 = scmp.eq.s32.totalorder %s26, 0
      %p110 = por %p108, %p109
      %p111 = scmp.ne.s32.totalorder %s99, %s100
      %p112 = scmp.eq.s32.totalorder %s27, 1
      %p113 = por %p111, %p112
      %p115 = scmp.ne.s32.totalorder %s100, %s114
      %p116 = scmp.eq.s32.totalorder %s27, 0
      %p117 = por %p115, %p116
      %s119 = sadd.s32 %s118, 1
      %p122 = scmp.eq.s32.totalorder %s21, 1
      %p123 = scmp.ne.s32.totalorder %s118, %s120
      %p124 = scmp.eq.s32.totalorder %s21, 0
      %p125 = por %p123, %p124
      %p126 = scmp.ne.s32.totalorder %s118, %s120
      %p127 = scmp.eq.s32.totalorder %s26, 1
      %p128 = por %p126, %p127
      %p129 = scmp.ne.s32.totalorder %s120, %s121
      %p130 = scmp.eq.s32.totalorder %s26, 0
      %p131 = por %p129, %p130
      %p132 = scmp.ne.s32.totalorder %s120, %s121
      %p133 = scmp.eq.s32.totalorder %s27, 1
      %p134 = por %p132, %p133
      %p136 = scmp.ne.s32.totalorder %s121, %s135
      %p137 = scmp.eq.s32.totalorder %s27, 0
      %p138 = por %p136, %p137
      %s140 = sadd.s32 %s139, 1
      %p143 = scmp.eq.s32.totalorder %s21, 1
      %p144 = scmp.ne.s32.totalorder %s139, %s141
      %p145 = scmp.eq.s32.totalorder %s21, 0
      %p146 = por %p144, %p145
      %p147 = scmp.ne.s32.totalorder %s139, %s141
      %p148 = scmp.eq.s32.totalorder %s26, 1
      %p149 = por %p147, %p148
      %p150 = scmp.ne.s32.totalorder %s141, %s142
      %p151 = scmp.eq.s32.totalorder %s26, 0
      %p152 = por %p150, %p151
      %p153 = scmp.ne.s32.totalorder %s141, %s142
      %p154 = scmp.eq.s32.totalorder %s27, 1
      %p155 = por %p153, %p154
      %p157 = scmp.ne.s32.totalorder %s142, %s156
      %p158 = scmp.eq.s32.totalorder %s27, 0
      %p159 = por %p157, %p158
      %s161 = sadd.s32 %s160, 1
      %p164 = scmp.eq.s32.totalorder %s21, 1
      %p165 = scmp.ne.s32.totalorder %s160, %s162
      %p166 = scmp.eq.s32.totalorder %s21, 0
      %p167 = por %p165, %p166
      %p168 = scmp.ne.s32.totalorder %s160, %s162
      %p169 = scmp.eq.s32.totalorder %s26, 1
      %p170 = por %p168, %p169
      %p171 = scmp.ne.s32.totalorder %s162, %s163
      %p172 = scmp.eq.s32.totalorder %s26, 0
      %p173 = por %p171, %p172
      %p174 = scmp.ne.s32.totalorder %s162, %s163
      %p175 = scmp.eq.s32.totalorder %s27, 1
      %p176 = por %p174, %p175
      %p178 = scmp.ne.s32.totalorder %s163, %s177
      %p179 = scmp.eq.s32.totalorder %s27, 0
      %p180 = por %p178, %p179
      %s181 = ssub.s32 %s21, %s28
      %p182 = scmp.eq.s32.totalorder %s181, 0
      %s184 = sadd.s32 %s183, 1
      %s185 = scalar_select %p182, %s183, %s184
      %p188 = pneg %p182
      %p189 = scmp.eq.s32.totalorder %s21, 1
      %p190 = por %p188, %p189
      %p191 = scmp.ne.s32.totalorder %s183, %s186
      %p192 = scmp.eq.s32.totalorder %s21, 0
      %p193 = por %p191, %p192
      %p194 = scmp.ne.s32.totalorder %s183, %s186
      %p195 = scmp.eq.s32.totalorder %s26, 1
      %p196 = por %p194, %p195
      %p197 = scmp.ne.s32.totalorder %s186, %s187
      %p198 = scmp.eq.s32.totalorder %s26, 0
      %p199 = por %p197, %p198
      %p200 = scmp.ne.s32.totalorder %s186, %s187
      %p201 = scmp.eq.s32.totalorder %s27, 1
      %p202 = por %p200, %p201
      %p204 = scmp.ne.s32.totalorder %s187, %s203
      %p205 = scmp.eq.s32.totalorder %s27, 0
      %p206 = por %p204, %p205
      %p207 = scmp.le.s32.totalorder 1, %s21
      %p208 = scmp.lt.s32.totalorder %s21, 3
      %p209 = pnand %p207, %p208
      %p210 = pneg %p209
      // Predicated region
      $region9: #{tpu_custom_call.1} parent=5 // pred_check
        _
      $region10: #{tpu_custom_call.1} parent=5 // pred_check_branch
        %212 = sbr.rel (%p209) target = $region12
      $region11: #{tpu_custom_call.1} parent=5 // pred_region
        %s213 = ssub.s32 %s21, 1
        // Predicated region
        $region13: #{tpu_custom_call.1} parent=11 // pred_check
          %p214 = pneg %p68
        $region14: #{tpu_custom_call.1} parent=11 // pred_check_branch
          %216 = sbr.rel (%p214) target = $region16
        $region15: #{tpu_custom_call.1} parent=11 // pred_region
          %s218 = ssub.s32 1024, 1024
          %219 = vsyncadd [#allocation8], %s218
          %s220 = sshll.u32 [#allocation7], 4
          %s221 = int_to_ptr.vmem [resolvable:$true] %s220
          %226 = dma.hbm_to_vmem [thread:$0]  %s1, 1024, %s221, [#allocation8], 64, 64, 4
        $region16: #{tpu_custom_call.1} parent=11 // pred_fallthru
          _
        // Predicated region
        $region17: #{tpu_custom_call.1} parent=11 // pred_check
          %p227 = pneg %p89
        $region18: #{tpu_custom_call.1} parent=11 // pred_check_branch
          %229 = sbr.rel (%p227) target = $region20
        $region19: #{tpu_custom_call.1} parent=11 // pred_region
          _
        $region20: #{tpu_custom_call.1} parent=11 // pred_fallthru
          _
        // Predicated region
        $region21: #{tpu_custom_call.1} parent=11 // pred_check
          %p230 = pneg %p110
        $region22: #{tpu_custom_call.1} parent=11 // pred_check_branch
          %232 = sbr.rel (%p230) target = $region24
        $region23: #{tpu_custom_call.1} parent=11 // pred_region
          %s234 = ssub.s32 1024, 1024
          %235 = vsyncadd [#allocation8], %s234
          %s236 = sshll.u32 [#allocation9], 4
          %s237 = int_to_ptr.vmem [resolvable:$true] %s236
          %242 = dma.hbm_to_vmem [thread:$0]  %s3, 1024, %s237, [#allocation8], 64, 64, 4
        $region24: #{tpu_custom_call.1} parent=11 // pred_fallthru
          _
        // Predicated region
        $region25: #{tpu_custom_call.1} parent=11 // pred_check
          %p243 = pneg %p131
        $region26: #{tpu_custom_call.1} parent=11 // pred_check_branch
          %245 = sbr.rel (%p243) target = $region28
        $region27: #{tpu_custom_call.1} parent=11 // pred_region
          _
        $region28: #{tpu_custom_call.1} parent=11 // pred_fallthru
          _
        // Predicated region
        $region29: #{tpu_custom_call.1} parent=11 // pred_check
          %p246 = pneg %p152
        $region30: #{tpu_custom_call.1} parent=11 // pred_check_branch
          %248 = sbr.rel (%p246) target = $region32
        $region31: #{tpu_custom_call.1} parent=11 // pred_region
          %s250 = ssub.s32 1024, 1024
          %251 = vsyncadd [#allocation11], %s250
          %s252 = sshll.u32 [#allocation10], 4
          %s253 = int_to_ptr.vmem [resolvable:$true] %s252
          %258 = dma.hbm_to_vmem [thread:$0]  %s5, 1024, %s253, [#allocation11], 64, 64, 4
        $region32: #{tpu_custom_call.1} parent=11 // pred_fallthru
          _
        // Predicated region
        $region33: #{tpu_custom_call.1} parent=11 // pred_check
          %p259 = pneg %p173
        $region34: #{tpu_custom_call.1} parent=11 // pred_check_branch
          %261 = sbr.rel (%p259) target = $region36
        $region35: #{tpu_custom_call.1} parent=11 // pred_region
          _
        $region36: #{tpu_custom_call.1} parent=11 // pred_fallthru
          _
      $region12: #{tpu_custom_call.1} parent=5 // pred_fallthru
        _
      %p262 = scmp.lt.s32.totalorder %s21, 2
      // Predicated region
      $region37: #{tpu_custom_call.1} parent=5 // pred_check
        %p263 = pneg %p262
      $region38: #{tpu_custom_call.1} parent=5 // pred_check_branch
        %265 = sbr.rel (%p263) target = $region40
      $region39: #{tpu_custom_call.1} parent=5 // pred_region
        // Predicated region
        $region41: #{tpu_custom_call.1} parent=39 // pred_check
          %p266 = pneg %p41
        $region42: #{tpu_custom_call.1} parent=39 // pred_check_branch
          %268 = sbr.rel (%p266) target = $region44
        $region43: #{tpu_custom_call.1} parent=39 // pred_region
          %s269 = sand.u32 %s31, 1
          %s270 = scalar_lea.sflag [#allocation5], %s269
          %s271 = sand.u32 %s31, 1
          %s272 = smul.addr %s271, 16
          %s273 = scalar_lea.vmem [#allocation4], %s272
          %s274 = smul.u32 4, %s21
          %s276 = ssub.s32 256, 256
          %277 = vsyncadd %s270, %s276
          %s278 = smul.addr %s274, 64
          %s279 = scalar_lea.hbm %s0, %s278
          %s280 = sshll.u32 %s273, 4
          %s281 = int_to_ptr.vmem [resolvable:$true] %s280
          %286 = dma.hbm_to_vmem [thread:$0]  %s279, 256, %s281, %s270, 64, 64, 4
        $region44: #{tpu_custom_call.1} parent=39 // pred_fallthru
          _
      $region40: #{tpu_custom_call.1} parent=5 // pred_fallthru
        _
      %p287 = scmp.le.s32.totalorder 1, %s21
      %p288 = scmp.lt.s32.totalorder %s21, 3
      %p289 = pnand %p287, %p288
      %p290 = pneg %p289
      // Predicated region
      $region45: #{tpu_custom_call.1} parent=5 // pred_check
        _
      $region46: #{tpu_custom_call.1} parent=5 // pred_check_branch
        %292 = sbr.rel (%p289) target = $region48
      $region47: #{tpu_custom_call.1} parent=5 // pred_region
        %s293 = ssub.s32 %s21, 1
        %s294 = sand.u32 %s34, 1
        %s295 = scalar_lea.sflag [#allocation5], %s294
        %s296 = sand.u32 %s34, 1
        %s297 = smul.addr %s296, 16
        %s298 = scalar_lea.vmem [#allocation4], %s297
        // Predicated region
        $region49: #{tpu_custom_call.1} parent=47 // pred_check
          %p299 = pneg %p47
        $region50: #{tpu_custom_call.1} parent=47 // pred_check_branch
          %301 = sbr.rel (%p299) target = $region52
        $region51: #{tpu_custom_call.1} parent=47 // pred_region
          %302 = dma.done %s295, 256
        $region52: #{tpu_custom_call.1} parent=47 // pred_fallthru
          _
        // Predicated region
        $region53: #{tpu_custom_call.1} parent=47 // pred_check
          %p303 = pneg %p68
        $region54: #{tpu_custom_call.1} parent=47 // pred_check_branch
          %305 = sbr.rel (%p303) target = $region56
        $region55: #{tpu_custom_call.1} parent=47 // pred_region
          %306 = dma.done [#allocation8], 1024
        $region56: #{tpu_custom_call.1} parent=47 // pred_fallthru
          _
        // Predicated region
        $region57: #{tpu_custom_call.1} parent=47 // pred_check
          %p307 = pneg %p110
        $region58: #{tpu_custom_call.1} parent=47 // pred_check_branch
          %309 = sbr.rel (%p307) target = $region60
        $region59: #{tpu_custom_call.1} parent=47 // pred_region
          %310 = dma.done [#allocation8], 1024
        $region60: #{tpu_custom_call.1} parent=47 // pred_fallthru
          _
        // Predicated region
        $region61: #{tpu_custom_call.1} parent=47 // pred_check
          %p311 = pneg %p152
        $region62: #{tpu_custom_call.1} parent=47 // pred_check_branch
          %313 = sbr.rel (%p311) target = $region64
        $region63: #{tpu_custom_call.1} parent=47 // pred_region
          %314 = dma.done [#allocation11], 1024
        $region64: #{tpu_custom_call.1} parent=47 // pred_fallthru
          _
        %s315 = sand.u32 %s34, 1
        %s316 = scalar_lea.sflag [#allocation5], %s315
        %s317 = sand.u32 %s34, 1
        %s318 = smul.addr %s317, 16
        %s319 = scalar_lea.vmem [#allocation4], %s318
        %p320 = pneg %p47
        %p321 = pneg %p44
        %p322 = pneg %p68
        %p323 = pneg %p65
        %p324 = pneg %p89
        %p325 = pneg %p86
        %p326 = pneg %p110
        %p327 = pneg %p107
        %p328 = pneg %p131
        %p329 = pneg %p128
        %p330 = pneg %p152
        %p331 = pneg %p149
        %p332 = pneg %p173
        %p333 = pneg %p170
        %p334 = pneg %p199
        %p335 = pneg %p196
        %s336 = sand.u32 %s186, 1
        %s337 = scalar_lea.sflag [#allocation6], %s336
        %s338 = sand.u32 %s186, 1
        %s339 = smul.addr %s338, 32
        %s340 = scalar_lea.vmem [#allocation12], %s339
        %s341 = smul.u32 4, %s26
        %s342 = smul.u32 4, %s26
        %v344 = vld [vmem:[%s298] sm:$0xf]
        %v345 = vld [vmem:[%s298 + $0x4] sm:$0xf]
        %v346 = vld [vmem:[%s298 + $0x8] sm:$0xf]
        %v347 = vld [vmem:[%s298 + $0xc] sm:$0xf]
        %v348 = vld [vmem:[#allocation7] sm:$0xf]
        %v349 = vld [vmem:[#allocation7 + $0x4] sm:$0xf]
        %v350 = vld [vmem:[#allocation7 + $0x8] sm:$0xf]
        %v351 = vld [vmem:[#allocation7 + $0xc] sm:$0xf]
        %v352 = vld [vmem:[#allocation7 + $0x10] sm:$0xf]
        %v353 = vld [vmem:[#allocation7 + $0x14] sm:$0xf]
        %v354 = vld [vmem:[#allocation7 + $0x18] sm:$0xf]
        %v355 = vld [vmem:[#allocation7 + $0x1c] sm:$0xf]
        %v356 = vld [vmem:[#allocation7 + $0x20] sm:$0xf]
        %v357 = vld [vmem:[#allocation7 + $0x24] sm:$0xf]
        %v358 = vld [vmem:[#allocation7 + $0x28] sm:$0xf]
        %v359 = vld [vmem:[#allocation7 + $0x2c] sm:$0xf]
        %v360 = vld [vmem:[#allocation7 + $0x30] sm:$0xf]
        %v361 = vld [vmem:[#allocation7 + $0x34] sm:$0xf]
        %v362 = vld [vmem:[#allocation7 + $0x38] sm:$0xf]
        %v363 = vld [vmem:[#allocation7 + $0x3c] sm:$0xf]
        %v364 = vld [vmem:[%s2] sm:$0x1]
        %v366 = vlaneseq
        %v367 = vshrl.u32 %v366, 7
        %v368 = vsub.s32 0, %v367
        %v369 = vrot.slane %v364, %v368
        %v375 = vunpack.c.l.b16 %v344
        %v376 = vunpack.c.l.b16 %v345
        %v377 = vunpack.c.l.b16 %v346
        %v378 = vunpack.c.l.b16 %v347
        %v379 = vpack.c.b16 %v376, %v375
        %v380 = vpack.c.b16 %v378, %v377
        %v399 = vunpack.c.l.b16 %v348
        %v400 = vunpack.c.l.b16 %v349
        %v401 = vunpack.c.l.b16 %v350
        %v402 = vunpack.c.l.b16 %v351
        %v403 = vunpack.c.l.b16 %v352
        %v404 = vunpack.c.l.b16 %v353
        %v405 = vunpack.c.l.b16 %v354
        %v406 = vunpack.c.l.b16 %v355
        %v407 = vunpack.c.l.b16 %v356
        %v408 = vunpack.c.l.b16 %v357
        %v409 = vunpack.c.l.b16 %v358
        %v410 = vunpack.c.l.b16 %v359
        %v411 = vunpack.c.l.b16 %v360
        %v412 = vunpack.c.l.b16 %v361
        %v413 = vunpack.c.l.b16 %v362
        %v414 = vunpack.c.l.b16 %v363
        %v415 = vpack.c.b16 %v400, %v399
        %v416 = vpack.c.b16 %v402, %v401
        %v417 = vpack.c.b16 %v404, %v403
        %v418 = vpack.c.b16 %v406, %v405
        %v419 = vpack.c.b16 %v408, %v407
        %v420 = vpack.c.b16 %v410, %v409
        %v421 = vpack.c.b16 %v412, %v411
        %v422 = vpack.c.b16 %v414, %v413
        %431 = vmatprep.subr.bf16.mxu0 0
        %432 = vmatpush1.bf16.msra.mxu0 %v422
        %433 = vmatprep.subr.bf16.mxu0 0
        %434 = vmatpush1.bf16.msra.mxu0 %v421
        %435 = vmatprep.subr.bf16.mxu0 0
        %436 = vmatpush1.bf16.msra.mxu0 %v420
        %437 = vmatprep.subr.bf16.mxu0 0
        %438 = vmatpush1.bf16.msra.mxu0 %v419
        %439 = vmatprep.subr.bf16.mxu0 0
        %440 = vmatpush1.bf16.msra.mxu0 %v418
        %441 = vmatprep.subr.bf16.mxu0 0
        %442 = vmatpush1.bf16.msra.mxu0 %v417
        %443 = vmatprep.subr.bf16.mxu0 0
        %444 = vmatpush1.bf16.msra.mxu0 %v416
        %445 = vmatprep.subr.bf16.mxu0 0
        %446 = vmatpush1.bf16.msra.mxu0 %v415
        %447 = vmatprep.subr.bf16.mxu0 0
        %448 = vmatpush2.bf16.msra.mxu0 0
        %449 = vmatprep.subr.bf16.mxu0 0
        %450 = vmatpush2.bf16.msra.mxu0 0
        %451 = vmatprep.subr.bf16.mxu0 0
        %452 = vmatpush2.bf16.msra.mxu0 0
        %453 = vmatprep.subr.bf16.mxu0 0
        %454 = vmatpush2.bf16.msra.mxu0 0
        %455 = vmatprep.subr.bf16.mxu0 0
        %456 = vmatpush2.bf16.msra.mxu0 0
        %457 = vmatprep.subr.bf16.mxu0 0
        %458 = vmatpush2.bf16.msra.mxu0 0
        %459 = vmatprep.subr.bf16.mxu0 0
        %460 = vmatpush2.bf16.msra.mxu0 0
        %461 = vmatprep.subr.bf16.mxu0 0
        %462 = vmatpush2.bf16.msra.mxu0 0
        %463 = vmatprep.mubr.bf16.mxu0 0
        %464 = vmatmul.mubr.bf16.gmra.mxu0 %v379
        %v465 = vpop.f32.mrf.mxu0
        %v466 = vadd.f32 %v369, %v465
        %v467 = vpop.f32.mrf.mxu0
        %v468 = vpop.f32.mrf.mxu0
        %v469 = vadd.f32 %v369, %v468
        %v470 = vpop.f32.mrf.mxu0
        %471 = vmatprep.mubr.bf16.mxu0 0
        %472 = vmatmul.mubr.bf16.gmra.mxu0 %v380
        %v473 = vpop.f32.mrf.mxu0
        %v474 = vadd.f32 %v369, %v473
        %v475 = vpop.f32.mrf.mxu0
        %v476 = vpop.f32.mrf.mxu0
        %v477 = vadd.f32 %v369, %v476
        %v478 = vpop.f32.mrf.mxu0
        %479 = vdwg.mxu0
        %v480 = vmax.f32 %v466, 0.0
        %v481 = vmax.f32 %v469, 0.0
        %v482 = vmax.f32 %v474, 0.0
        %v483 = vmax.f32 %v477, 0.0
        %v484 = vpack.c.bf16 %v481, %v480
        %v485 = vpack.c.bf16 %v483, %v482
        %v488 = vunpack.c.l.b16 %v484
        %v489 = vunpack.c.h.b16 %v484
        %v490 = vunpack.c.l.b16 %v485
        %v491 = vunpack.c.h.b16 %v485
        %v492 = vpack.c.b16 %v488, %v488
        %v493 = vpack.c.b16 %v489, %v489
        %v494 = vpack.c.b16 %v490, %v490
        %v495 = vpack.c.b16 %v491, %v491
        %500 = vst [vmem:[#allocation2] sm:$0xf] %v492
        %501 = vst [vmem:[#allocation2 + $0x4] sm:$0xf] %v493
        %502 = vst [vmem:[#allocation2 + $0x8] sm:$0xf] %v494
        %503 = vst [vmem:[#allocation2 + $0xc] sm:$0xf] %v495
        %v504 = vld [vmem:[#allocation2] sm:$0xf]
        %v505 = vld [vmem:[#allocation2 + $0x4] sm:$0xf]
        %v506 = vld [vmem:[#allocation2 + $0x8] sm:$0xf]
        %v507 = vld [vmem:[#allocation2 + $0xc] sm:$0xf]
        %v508 = vld [vmem:[#allocation9] sm:$0xf]
        %v509 = vld [vmem:[#allocation9 + $0x4] sm:$0xf]
        %v510 = vld [vmem:[#allocation9 + $0x8] sm:$0xf]
        %v511 = vld [vmem:[#allocation9 + $0xc] sm:$0xf]
        %v512 = vld [vmem:[#allocation9 + $0x10] sm:$0xf]
        %v513 = vld [vmem:[#allocation9 + $0x14] sm:$0xf]
        %v514 = vld [vmem:[#allocation9 + $0x18] sm:$0xf]
        %v515 = vld [vmem:[#allocation9 + $0x1c] sm:$0xf]
        %v516 = vld [vmem:[#allocation9 + $0x20] sm:$0xf]
        %v517 = vld [vmem:[#allocation9 + $0x24] sm:$0xf]
        %v518 = vld [vmem:[#allocation9 + $0x28] sm:$0xf]
        %v519 = vld [vmem:[#allocation9 + $0x2c] sm:$0xf]
        %v520 = vld [vmem:[#allocation9 + $0x30] sm:$0xf]
        %v521 = vld [vmem:[#allocation9 + $0x34] sm:$0xf]
        %v522 = vld [vmem:[#allocation9 + $0x38] sm:$0xf]
        %v523 = vld [vmem:[#allocation9 + $0x3c] sm:$0xf]
        %v524 = vld [vmem:[%s4] sm:$0x1]
        %v526 = vlaneseq
        %v527 = vshrl.u32 %v526, 7
        %v528 = vsub.s32 0, %v527
        %v529 = vrot.slane %v524, %v528
        %v535 = vunpack.c.l.b16 %v504
        %v536 = vunpack.c.l.b16 %v505
        %v537 = vunpack.c.l.b16 %v506
        %v538 = vunpack.c.l.b16 %v507
        %v539 = vpack.c.b16 %v536, %v535
        %v540 = vpack.c.b16 %v538, %v537
        %v559 = vunpack.c.l.b16 %v508
        %v560 = vunpack.c.l.b16 %v509
        %v561 = vunpack.c.l.b16 %v510
        %v562 = vunpack.c.l.b16 %v511
        %v563 = vunpack.c.l.b16 %v512
        %v564 = vunpack.c.l.b16 %v513
        %v565 = vunpack.c.l.b16 %v514
        %v566 = vunpack.c.l.b16 %v515
        %v567 = vunpack.c.l.b16 %v516
        %v568 = vunpack.c.l.b16 %v517
        %v569 = vunpack.c.l.b16 %v518
        %v570 = vunpack.c.l.b16 %v519
        %v571 = vunpack.c.l.b16 %v520
        %v572 = vunpack.c.l.b16 %v521
        %v573 = vunpack.c.l.b16 %v522
        %v574 = vunpack.c.l.b16 %v523
        %v575 = vpack.c.b16 %v560, %v559
        %v576 = vpack.c.b16 %v562, %v561
        %v577 = vpack.c.b16 %v564, %v563
        %v578 = vpack.c.b16 %v566, %v565
        %v579 = vpack.c.b16 %v568, %v567
        %v580 = vpack.c.b16 %v570, %v569
        %v581 = vpack.c.b16 %v572, %v571
        %v582 = vpack.c.b16 %v574, %v573
        %591 = vmatprep.subr.bf16.mxu0 0
        %592 = vmatpush1.bf16.msra.mxu0 %v582
        %593 = vmatprep.subr.bf16.mxu0 0
        %594 = vmatpush1.bf16.msra.mxu0 %v581
        %595 = vmatprep.subr.bf16.mxu0 0
        %596 = vmatpush1.bf16.msra.mxu0 %v580
        %597 = vmatprep.subr.bf16.mxu0 0
        %598 = vmatpush1.bf16.msra.mxu0 %v579
        %599 = vmatprep.subr.bf16.mxu0 0
        %600 = vmatpush1.bf16.msra.mxu0 %v578
        %601 = vmatprep.subr.bf16.mxu0 0
        %602 = vmatpush1.bf16.msra.mxu0 %v577
        %603 = vmatprep.subr.bf16.mxu0 0
        %604 = vmatpush1.bf16.msra.mxu0 %v576
        %605 = vmatprep.subr.bf16.mxu0 0
        %606 = vmatpush1.bf16.msra.mxu0 %v575
        %607 = vmatprep.subr.bf16.mxu0 0
        %608 = vmatpush2.bf16.msra.mxu0 0
        %609 = vmatprep.subr.bf16.mxu0 0
        %610 = vmatpush2.bf16.msra.mxu0 0
        %611 = vmatprep.subr.bf16.mxu0 0
        %612 = vmatpush2.bf16.msra.mxu0 0
        %613 = vmatprep.subr.bf16.mxu0 0
        %614 = vmatpush2.bf16.msra.mxu0 0
        %615 = vmatprep.subr.bf16.mxu0 0
        %616 = vmatpush2.bf16.msra.mxu0 0
        %617 = vmatprep.subr.bf16.mxu0 0
        %618 = vmatpush2.bf16.msra.mxu0 0
        %619 = vmatprep.subr.bf16.mxu0 0
        %620 = vmatpush2.bf16.msra.mxu0 0
        %621 = vmatprep.subr.bf16.mxu0 0
        %622 = vmatpush2.bf16.msra.mxu0 0
        %623 = vmatprep.mubr.bf16.mxu0 0
        %624 = vmatmul.mubr.bf16.gmra.mxu0 %v539
        %v625 = vpop.f32.mrf.mxu0
        %v626 = vadd.f32 %v529, %v625
        %v627 = vpop.f32.mrf.mxu0
        %v628 = vpop.f32.mrf.mxu0
        %v629 = vadd.f32 %v529, %v628
        %v630 = vpop.f32.mrf.mxu0
        %631 = vmatprep.mubr.bf16.mxu0 0
        %632 = vmatmul.mubr.bf16.gmra.mxu0 %v540
        %v633 = vpop.f32.mrf.mxu0
        %v634 = vadd.f32 %v529, %v633
        %v635 = vpop.f32.mrf.mxu0
        %v636 = vpop.f32.mrf.mxu0
        %v637 = vadd.f32 %v529, %v636
        %v638 = vpop.f32.mrf.mxu0
        %639 = vdwg.mxu0
        %v640 = vmax.f32 %v626, 0.0
        %v641 = vmax.f32 %v629, 0.0
        %v642 = vmax.f32 %v634, 0.0
        %v643 = vmax.f32 %v637, 0.0
        %v644 = vpack.c.bf16 %v641, %v640
        %v645 = vpack.c.bf16 %v643, %v642
        %v648 = vunpack.c.l.b16 %v644
        %v649 = vunpack.c.h.b16 %v644
        %v650 = vunpack.c.l.b16 %v645
        %v651 = vunpack.c.h.b16 %v645
        %v652 = vpack.c.b16 %v648, %v648
        %v653 = vpack.c.b16 %v649, %v649
        %v654 = vpack.c.b16 %v650, %v650
        %v655 = vpack.c.b16 %v651, %v651
        %660 = vst [vmem:[#allocation3] sm:$0xf] %v652
        %661 = vst [vmem:[#allocation3 + $0x4] sm:$0xf] %v653
        %662 = vst [vmem:[#allocation3 + $0x8] sm:$0xf] %v654
        %663 = vst [vmem:[#allocation3 + $0xc] sm:$0xf] %v655
        %v664 = vld [vmem:[#allocation3] sm:$0xf]
        %v665 = vld [vmem:[#allocation3 + $0x4] sm:$0xf]
        %v666 = vld [vmem:[#allocation3 + $0x8] sm:$0xf]
        %v667 = vld [vmem:[#allocation3 + $0xc] sm:$0xf]
        %v668 = vld [vmem:[#allocation10] sm:$0xf]
        %v669 = vld [vmem:[#allocation10 + $0x4] sm:$0xf]
        %v670 = vld [vmem:[#allocation10 + $0x8] sm:$0xf]
        %v671 = vld [vmem:[#allocation10 + $0xc] sm:$0xf]
        %v672 = vld [vmem:[#allocation10 + $0x10] sm:$0xf]
        %v673 = vld [vmem:[#allocation10 + $0x14] sm:$0xf]
        %v674 = vld [vmem:[#allocation10 + $0x18] sm:$0xf]
        %v675 = vld [vmem:[#allocation10 + $0x1c] sm:$0xf]
        %v676 = vld [vmem:[#allocation10 + $0x20] sm:$0xf]
        %v677 = vld [vmem:[#allocation10 + $0x24] sm:$0xf]
        %v678 = vld [vmem:[#allocation10 + $0x28] sm:$0xf]
        %v679 = vld [vmem:[#allocation10 + $0x2c] sm:$0xf]
        %v680 = vld [vmem:[#allocation10 + $0x30] sm:$0xf]
        %v681 = vld [vmem:[#allocation10 + $0x34] sm:$0xf]
        %v682 = vld [vmem:[#allocation10 + $0x38] sm:$0xf]
        %v683 = vld [vmem:[#allocation10 + $0x3c] sm:$0xf]
        %v684 = vld [vmem:[%s6] sm:$0x1]
        %v686 = vlaneseq
        %v687 = vshrl.u32 %v686, 7
        %v688 = vsub.s32 0, %v687
        %v689 = vrot.slane %v684, %v688
        %v695 = vunpack.c.l.b16 %v664
        %v696 = vunpack.c.l.b16 %v665
        %v697 = vunpack.c.l.b16 %v666
        %v698 = vunpack.c.l.b16 %v667
        %v699 = vpack.c.b16 %v696, %v695
        %v700 = vpack.c.b16 %v698, %v697
        %v719 = vunpack.c.l.b16 %v668
        %v720 = vunpack.c.l.b16 %v669
        %v721 = vunpack.c.l.b16 %v670
        %v722 = vunpack.c.l.b16 %v671
        %v723 = vunpack.c.l.b16 %v672
        %v724 = vunpack.c.l.b16 %v673
        %v725 = vunpack.c.l.b16 %v674
        %v726 = vunpack.c.l.b16 %v675
        %v727 = vunpack.c.l.b16 %v676
        %v728 = vunpack.c.l.b16 %v677
        %v729 = vunpack.c.l.b16 %v678
        %v730 = vunpack.c.l.b16 %v679
        %v731 = vunpack.c.l.b16 %v680
        %v732 = vunpack.c.l.b16 %v681
        %v733 = vunpack.c.l.b16 %v682
        %v734 = vunpack.c.l.b16 %v683
        %v735 = vpack.c.b16 %v720, %v719
        %v736 = vpack.c.b16 %v722, %v721
        %v737 = vpack.c.b16 %v724, %v723
        %v738 = vpack.c.b16 %v726, %v725
        %v739 = vpack.c.b16 %v728, %v727
        %v740 = vpack.c.b16 %v730, %v729
        %v741 = vpack.c.b16 %v732, %v731
        %v742 = vpack.c.b16 %v734, %v733
        %751 = vmatprep.subr.bf16.mxu0 0
        %752 = vmatpush1.bf16.msra.mxu0 %v742
        %753 = vmatprep.subr.bf16.mxu0 0
        %754 = vmatpush1.bf16.msra.mxu0 %v741
        %755 = vmatprep.subr.bf16.mxu0 0
        %756 = vmatpush1.bf16.msra.mxu0 %v740
        %757 = vmatprep.subr.bf16.mxu0 0
        %758 = vmatpush1.bf16.msra.mxu0 %v739
        %759 = vmatprep.subr.bf16.mxu0 0
        %760 = vmatpush1.bf16.msra.mxu0 %v738
        %761 = vmatprep.subr.bf16.mxu0 0
        %762 = vmatpush1.bf16.msra.mxu0 %v737
        %763 = vmatprep.subr.bf16.mxu0 0
        %764 = vmatpush1.bf16.msra.mxu0 %v736
        %765 = vmatprep.subr.bf16.mxu0 0
        %766 = vmatpush1.bf16.msra.mxu0 %v735
        %767 = vmatprep.subr.bf16.mxu0 0
        %768 = vmatpush2.bf16.msra.mxu0 0
        %769 = vmatprep.subr.bf16.mxu0 0
        %770 = vmatpush2.bf16.msra.mxu0 0
        %771 = vmatprep.subr.bf16.mxu0 0
        %772 = vmatpush2.bf16.msra.mxu0 0
        %773 = vmatprep.subr.bf16.mxu0 0
        %774 = vmatpush2.bf16.msra.mxu0 0
        %775 = vmatprep.subr.bf16.mxu0 0
        %776 = vmatpush2.bf16.msra.mxu0 0
        %777 = vmatprep.subr.bf16.mxu0 0
        %778 = vmatpush2.bf16.msra.mxu0 0
        %779 = vmatprep.subr.bf16.mxu0 0
        %780 = vmatpush2.bf16.msra.mxu0 0
        %781 = vmatprep.subr.bf16.mxu0 0
        %782 = vmatpush2.bf16.msra.mxu0 0
        %783 = vmatprep.mubr.bf16.mxu0 0
        %784 = vmatmul.mubr.bf16.gmra.mxu0 %v699
        %v785 = vpop.f32.mrf.mxu0
        %v786 = vadd.f32 %v689, %v785
        %v787 = vpop.f32.mrf.mxu0
        %v788 = vpop.f32.mrf.mxu0
        %v789 = vadd.f32 %v689, %v788
        %v790 = vpop.f32.mrf.mxu0
        %791 = vmatprep.mubr.bf16.mxu0 0
        %792 = vmatmul.mubr.bf16.gmra.mxu0 %v700
        %v793 = vpop.f32.mrf.mxu0
        %v794 = vadd.f32 %v689, %v793
        %v795 = vpop.f32.mrf.mxu0
        %v796 = vpop.f32.mrf.mxu0
        %v797 = vadd.f32 %v689, %v796
        %v798 = vpop.f32.mrf.mxu0
        %799 = vdwg.mxu0
        %800 = vst [vmem:[%s340] sm:$0xff] %v786
        %801 = vst [vmem:[%s340 + $0x8] sm:$0xff] %v789
        %802 = vst [vmem:[%s340 + $0x10] sm:$0xff] %v794
        %803 = vst [vmem:[%s340 + $0x18] sm:$0xff] %v797
        %s804 = sand.u32 %s186, 1
        %s805 = scalar_lea.sflag [#allocation6], %s804
        %s806 = sand.u32 %s186, 1
        %s807 = smul.addr %s806, 32
        %s808 = scalar_lea.vmem [#allocation12], %s807
        // Predicated region
        $region65: #{tpu_custom_call.1} parent=47 // pred_check
          %p809 = pneg %p196
        $region66: #{tpu_custom_call.1} parent=47 // pred_check_branch
          %811 = sbr.rel (%p809) target = $region68
        $region67: #{tpu_custom_call.1} parent=47 // pred_region
          %s812 = smul.u32 4, %s26
          %s814 = ssub.s32 512, 512
          %815 = vsyncadd %s805, %s814
          %s816 = smul.addr %s812, 128
          %s817 = scalar_lea.hbm %s7, %s816
          %s818 = sshll.u32 %s808, 4
          %s819 = int_to_ptr.vmem [resolvable:$true] %s818
          %824 = dma.vmem_to_hbm [thread:$0]  %s819, 512, %s817, %s805, 128, 128, 8
        $region68: #{tpu_custom_call.1} parent=47 // pred_fallthru
          _
      $region48: #{tpu_custom_call.1} parent=5 // pred_fallthru
        _
      %p825 = scmp.le.s32.totalorder 2, %s21
      // Predicated region
      $region69: #{tpu_custom_call.1} parent=5 // pred_check
        %p826 = pneg %p825
      $region70: #{tpu_custom_call.1} parent=5 // pred_check_branch
        %828 = sbr.rel (%p826) target = $region72
      $region71: #{tpu_custom_call.1} parent=5 // pred_region
        %s829 = ssub.s32 %s21, 2
        // Predicated region
        $region73: #{tpu_custom_call.1} parent=71 // pred_check
          %p830 = pneg %p202
        $region74: #{tpu_custom_call.1} parent=71 // pred_check_branch
          %832 = sbr.rel (%p830) target = $region76
        $region75: #{tpu_custom_call.1} parent=71 // pred_region
          %s833 = sand.u32 %s187, 1
          %s834 = scalar_lea.sflag [#allocation6], %s833
          %s835 = sand.u32 %s187, 1
          %s836 = smul.addr %s835, 32
          %s837 = scalar_lea.vmem [#allocation12], %s836
          %838 = dma.done %s834, 512
        $region76: #{tpu_custom_call.1} parent=71 // pred_fallthru
          _
      $region72: #{tpu_custom_call.1} parent=5 // pred_fallthru
        _
    $region6: #{tpu_custom_call.1} parent=1 // loop_footer
      %s25 = sadd.s32 1, %s21
    $region7: #{tpu_custom_call.1} parent=1 // loop_footer_branch
      %20 = sbr.rel target = $region3
    $region8: #{tpu_custom_call.1} parent=1 // loop_exit
      _
    %839 = vsyncpa [#allocation5], 1
    %s840 = scalar_lea.sflag [#allocation5], 1
    %841 = vsyncpa %s840, 1
    %842 = vsyncpa [#allocation8], 1
    %843 = vsyncpa [#allocation11], 1
    %844 = vsyncpa [#allocation6], 1
    %s845 = scalar_lea.sflag [#allocation6], 1
    %846 = vsyncpa %s845, 1

</llo_original>
